<compile_context>
chip_gen: v5e
topology: v5e:2x2
jax: 0.10.0
libtpu: 0.0.40
codegen_flags: <defaults>
</compile_context>

<pallas_src>
import math
import numpy as np
import jax
import jax.numpy as jnp
from jax import lax
from jax.experimental import pallas as pl
from jax.experimental.pallas import tpu as pltpu


# ----------------------------------------------------------------------------
# generation-aware VMEM budgets
# ----------------------------------------------------------------------------
def _tpu_vmem_capacity():
    try:
        cap = getattr(pltpu.get_tpu_info(), "vmem_capacity_bytes", None)
        if cap:
            return int(cap)
    except Exception:
        pass
    return 64 * 1024 * 1024        # conservative fallback (v7x per-TC VMEM)


_VMEM_CAP = _tpu_vmem_capacity()
# scoped limit: ~96 MiB on 128-MiB parts (v5e/v6e), 48 MiB on v7x (64 MiB).
_VMEM_LIMIT = max(min((_VMEM_CAP * 3) // 4, _VMEM_CAP - 16 * 1024 * 1024),
                  32 * 1024 * 1024)
# per-step footprint target (leaves double-buffer / compiler-scratch headroom)
_TILE_BUDGET = (_VMEM_LIMIT * 3) // 5


# ----------------------------------------------------------------------------
# small helpers (host-side)
# ----------------------------------------------------------------------------
def sigmoid_rampup(current, rampup_length):
    # ramps.sigmoid_rampup from the reference code base
    if rampup_length == 0:
        return 1.0
    current = float(np.clip(current, 0.0, rampup_length))
    phase = 1.0 - current / rampup_length
    return float(np.exp(-5.0 * phase * phase))


def _linear_interp_matrix(in_size, out_size):
    # PyTorch F.interpolate(mode='bilinear', align_corners=False) 1-D weights.
    W = np.zeros((out_size, in_size), dtype=np.float32)
    scale = in_size / out_size
    for o in range(out_size):
        src = (o + 0.5) * scale - 0.5
        src = max(src, 0.0)
        i0 = int(np.floor(src))
        i0 = min(i0, in_size - 1)
        i1 = min(i0 + 1, in_size - 1)
        lam = src - i0
        W[o, i0] += 1.0 - lam
        W[o, i1] += lam
    return W


def _nearest_indices(in_size, out_size):
    scale = in_size / out_size
    idx = np.minimum(np.floor(np.arange(out_size) * scale), in_size - 1)
    return idx.astype(np.int32)


def nearest_resize_2d(x, h_out, w_out):
    # x: (B, H, W). Plain-JAX glue (the reference computes this under no_grad).
    ih = _nearest_indices(x.shape[1], h_out)
    iw = _nearest_indices(x.shape[2], w_out)
    return x[:, ih][:, :, iw]


def _pick_tile(n, bytes_per_row=0, budget_bytes=None):
    """Largest lane-friendly tile (multiple of 128) that divides n and fits the
    per-step VMEM budget; fall back to the full extent for small n."""
    if budget_bytes is None:
        budget_bytes = _TILE_BUDGET
    for t in (2048, 1024, 512, 256, 128):
        if t <= n and n % t == 0:
            if bytes_per_row and t * bytes_per_row > budget_bytes:
                continue
            return t
    # TODO(synk): N not a multiple of 128 (or nothing fits the budget) falls
    # back to the full extent; production callers should pad N to a lane
    # multiple to avoid holding the whole map in VMEM.
    return n


def _pick_htile(h_out):
    """Output-row tile for the resize kernel (multiple of 8, >=2 tiles when
    possible so both v7x TensorCores get work even with bz == 1)."""
    for t in (256, 128, 64, 32, 16, 8):
        if t < h_out and h_out % t == 0:
            return t
    return h_out


def _softmax_rows(x, c):
    """Softmax across the leading (channel) axis of a (c, T) lane-dense array,
    unrolled as elementwise max/add over the c rows (no narrow-lane reductions)."""
    m = x[0:1, :]
    for i in range(1, c):
        m = jnp.maximum(m, x[i:i + 1, :])
    e = jnp.exp(x - m)
    s = e[0:1, :]
    for i in range(1, c):
        s = s + e[i:i + 1, :]
    return e * pl.reciprocal(s, approx=True)


# ----------------------------------------------------------------------------
# Pallas kernel 1: channel-major seg probabilities (softmax over C, twice).
# Only the outputs the wrapper actually consumes are computed / written.
# ----------------------------------------------------------------------------
def seg_probs_cm(seg, want_prob=True, want_sm=True):
    """seg: (bz, C, h, w) NCHW -> (prob, prob_softmax) channel-major (bz, C, h*w);
    entries not requested are returned as None (and never written to HBM)."""
    assert want_prob or want_sm
    bz, C, h, w = seg.shape
    N = h * w
    x = seg.reshape(bz, C, N).astype(jnp.float32)
    n_out = int(want_prob) + int(want_sm)
    per_row = C * 4 * 2 * (1 + n_out)          # in + out blocks, double-buffered
    tile = _pick_tile(N, per_row)

    def kernel(x_ref, *o_refs):
        p = _softmax_rows(x_ref[...], C)
        idx = 0
        if want_prob:
            o_refs[idx][...] = p
            idx += 1
        if want_sm:
            o_refs[idx][...] = _softmax_rows(p, C)

    out_shape = tuple(jax.ShapeDtypeStruct((bz, C, N), jnp.float32)
                      for _ in range(n_out))
    out_specs = tuple(pl.BlockSpec((None, C, tile), lambda b, t: (b, 0, t))
                      for _ in range(n_out))
    outs = pl.pallas_call(
        kernel,
        out_shape=out_shape,
        grid=(bz, N // tile),
        in_specs=[pl.BlockSpec((None, C, tile), lambda b, t: (b, 0, t))],
        out_specs=out_specs,
        compiler_params=pltpu.CompilerParams(
            dimension_semantics=("parallel", "parallel"),
            vmem_limit_bytes=_VMEM_LIMIT),
    )(x)
    outs = list(outs)
    prob = outs.pop(0) if want_prob else None
    sm = outs.pop(0) if want_sm else None
    return prob, sm


# ----------------------------------------------------------------------------
# Pallas kernel 2 (fused per stage): attention average + entropy mask +
#   single attn @ prob matmul + pseudo-label + ROI-masked L1 loss accumulation
# ----------------------------------------------------------------------------
def stage_affinity_fused(attn_list, ema_list, pk_cm, pt_sm_cm, roi, threshold):
    """
    attn_list : list of L arrays (bz, heads, N, M)  -- student attention layers
                (bf16 or f32; cast to f32 after load)
    ema_list  : list of L arrays (bz, heads, N, M) or None (reuse attn average)
    pk_cm     : (bz, C, M)  channel-major key probabilities (prob16 / prob32)
    pt_sm_cm  : (bz, C, N)  channel-major target prob-softmax
    roi       : (bz, 1, N)  float ROI mask
    returns   : pusdo_cm (bz, C, N), loss (bz, 1, 1)
    """
    L = len(attn_list)
    has_ema = ema_list is not None
    if has_ema:
        assert len(ema_list) == L
    bz, nh, N, M = attn_list[0].shape
    C = pk_cm.shape[1]
    n_attn = L * (2 if has_ema else 1)
    attn_bytes = attn_list[0].dtype.itemsize

    # per-query-row VMEM: attention double buffers + pt/roi in + pusdo out
    # + f32 intermediates (per-head cast, head sum, layer acc, avg, entropy).
    per_row = (n_attn * nh * M * attn_bytes * 2
               + 8 * M * 4
               + (2 * C + 2) * 4 * 2)
    fixed = C * M * 4 * 2 + (2 << 20)          # pk double buffer + slack
    tile = _pick_tile(N, per_row, max(_TILE_BUDGET - fixed, 4 << 20))
    n_tiles = N // tile
    thr = float(threshold)
    inv_L = 1.0 / float(L)
    inv_C = 1.0 / float(C)

    def kernel(*refs):
        a_refs = refs[:L]
        e_refs = refs[L:2 * L] if has_ema else a_refs
        base = 2 * L if has_ema else L
        pk_ref, pt_ref, roi_ref = refs[base], refs[base + 1], refs[base + 2]
        pusdo_ref, loss_ref = refs[base + 3], refs[base + 4]

        @pl.when(pl.program_id(1) == 0)
        def _():
            loss_ref[...] = jnp.zeros_like(loss_ref)

        def layer_avg(rs):
            acc = None
            for r in rs:
                s = r[0].astype(jnp.float32)                 # (tile, M)
                for hh in range(1, nh):                      # head sum, no big temp
                    s = s + r[hh].astype(jnp.float32)
                rsum = jnp.sum(s, axis=-1, keepdims=True)    # (tile, 1)
                s = s * pl.reciprocal(rsum)                  # tile recips, not tile*M divides
                acc = s if acc is None else acc + s
            return acc * inv_L                               # (tile, M)

        a_avg = layer_avg(a_refs)
        e_avg = a_avg if not has_ema else layer_avg(e_refs)

        # Per-query entropy of the EMA average. The reduction over M is done on
        # the MXU so the result comes out lane-oriented (1, tile).
        dn = (((1,), (1,)), ((), ()))
        neg_elog = -(e_avg * jnp.log(e_avg + 1e-6))          # (tile, M)
        ones_row = jnp.ones((1, M), jnp.float32)
        ent = lax.dot_general(ones_row, neg_elog, dn,
                              preferred_element_type=jnp.float32)     # (1, tile)
        keep = ent <= thr                                              # (1, tile) bool

        # Single matmul: raw[c, n] = sum_m prob_key[m, c] * attn_avg[n, m]
        raw = lax.dot_general(pk_ref[...], a_avg, dn,
                              preferred_element_type=jnp.float32)      # (C, tile)
        aff = _softmax_rows(raw, C)                          # unmasked -> loss path
        # Reference zeroes whole query rows of the attention, so its pseudo
        # label is uniform 1/C for masked queries and == aff for kept ones.
        pusdo_ref[...] = jnp.where(keep, aff, inv_C)

        diff = jnp.abs(aff - pt_ref[...]) * roi_ref[...]               # (C, tile)
        loss_ref[...] = loss_ref[...] + jnp.sum(diff, axis=(0, 1),
                                                keepdims=True)         # (1, 1)

    # NOTE: if a profile shows exposed DMA on 128-MiB parts, the attention
    # BlockSpecs can take pipeline_mode=pl.Buffered(3) (extra buffer counted in
    # per_row); kept at the default depth here.
    attn_specs = [pl.BlockSpec((None, nh, tile, M), lambda b, t: (b, 0, t, 0))
                  for _ in range(n_attn)]
    in_specs = attn_specs + [
        pl.BlockSpec((None, C, M), lambda b, t: (b, 0, 0)),     # pk (reused across tiles)
        pl.BlockSpec((None, C, tile), lambda b, t: (b, 0, t)),  # target prob-softmax
        pl.BlockSpec((None, 1, tile), lambda b, t: (b, 0, t)),  # roi (lane-dense)
    ]
    out_specs = (pl.BlockSpec((None, C, tile), lambda b, t: (b, 0, t)),
                 pl.BlockSpec((None, 1, 1), lambda b, t: (b, 0, 0)))   # accumulator

    args = list(attn_list) + (list(ema_list) if has_ema else []) + [pk_cm, pt_sm_cm, roi]
    return pl.pallas_call(
        kernel,
        out_shape=(jax.ShapeDtypeStruct((bz, C, N), jnp.float32),
                   jax.ShapeDtypeStruct((bz, 1, 1), jnp.float32)),
        grid=(bz, n_tiles),
        in_specs=in_specs,
        out_specs=out_specs,
        compiler_params=pltpu.CompilerParams(
            dimension_semantics=("parallel", "arbitrary"),
            vmem_limit_bytes=_VMEM_LIMIT),
    )(*args)


# ----------------------------------------------------------------------------
# Pallas kernel 3: fused bilinear resize of the pseudo-label maps + average
# ----------------------------------------------------------------------------
def resize_average(imgs, h_out, w_out, divisor):
    """imgs: list of arrays (bz, C, h_s, w_s) -> (bz, C, h_out, w_out):
    PyTorch-style bilinear (align_corners=False) resize of each map, summed and
    divided by `divisor`, in a single pallas_call. The width resize is batched
    across all C channels in one MXU pass per stage ((C*h_s, w_s) x (w_s, w_out));
    output rows are tiled on a second parallel grid axis."""
    bz, C = imgs[0].shape[:2]
    n_stage = len(imgs)
    hs_list = [int(img.shape[2]) for img in imgs]
    ws_list = [int(img.shape[3]) for img in imgs]
    whs = [jnp.asarray(_linear_interp_matrix(h, h_out)) for h in hs_list]     # (h_out, h_s)
    wws = [jnp.asarray(_linear_interp_matrix(w, w_out).T) for w in ws_list]   # (w_s, w_out)
    # (bz, C, h_s, w_s) -> (bz, C*h_s, w_s): pure metadata reshape in XLA.
    imgs2d = [img.astype(jnp.float32).reshape(bz, C * h, w)
              for img, h, w in zip(imgs, hs_list, ws_list)]
    inv = 1.0 / float(divisor)
    tile_h = _pick_htile(h_out)
    n_htiles = h_out // tile_h

    def kernel(*refs):
        img_refs = refs[:n_stage]
        wh_refs = refs[n_stage:2 * n_stage]
        ww_refs = refs[2 * n_stage:3 * n_stage]
        o_ref = refs[3 * n_stage]
        accs = [None] * C
        for s in range(n_stage):
            h_s = hs_list[s]
            # one wide MXU pass for all channels (N widened 4x vs per-channel)
            t = jnp.dot(img_refs[s][...], ww_refs[s][...],
                        preferred_element_type=jnp.float32)            # (C*h_s, w_out)
            wh = wh_refs[s][...]                                        # (tile_h, h_s)
            for c in range(C):
                r = jnp.dot(wh, t[c * h_s:(c + 1) * h_s, :],
                            preferred_element_type=jnp.float32)         # (tile_h, w_out)
                accs[c] = r if accs[c] is None else accs[c] + r
        for c in range(C):
            o_ref[c, :, :] = accs[c] * inv

    in_specs = (
        [pl.BlockSpec((None, C * h, w), lambda b, t: (b, 0, 0))
         for h, w in zip(hs_list, ws_list)]
        + [pl.BlockSpec((tile_h, h), lambda b, t: (t, 0)) for h in hs_list]
        + [pl.BlockSpec((w, w_out), lambda b, t: (0, 0)) for w in ws_list]
    )
    return pl.pallas_call(
        kernel,
        out_shape=jax.ShapeDtypeStruct((bz, C, h_out, w_out), jnp.float32),
        grid=(bz, n_htiles),
        in_specs=in_specs,
        out_specs=pl.BlockSpec((None, C, tile_h, w_out), lambda b, t: (b, 0, t, 0)),
        compiler_params=pltpu.CompilerParams(
            dimension_semantics=("parallel", "parallel"),
            vmem_limit_bytes=_VMEM_LIMIT),
    )(*imgs2d, *whs, *wws)


# ----------------------------------------------------------------------------
# wrapper reproducing SegformerAffinityEnergyLoss.forward
# ----------------------------------------------------------------------------
def segformer_affinity_energy_loss(outputs, low_feats, unlabeled_ROIs, targets,
                                   ema_att, max_iterations, iter_num,
                                   class_num=4, loss_index=3):
    seg, seg_16, seg_32, seg_64 = outputs
    bz = seg.shape[0]
    bz_label = targets.shape[0]

    _, _, h128, w128 = seg.shape
    _, _, h16, w16 = seg_16.shape
    _, _, h32, w32 = seg_32.shape
    _, _, h64, w64 = seg_64.shape

    # Only the consumed outputs are computed (prob128_cm / prob64_cm / prob16_sm
    # were dead in the reference's data flow).
    _, prob128_sm = seg_probs_cm(seg, want_prob=False, want_sm=True)
    prob16_cm, _ = seg_probs_cm(seg_16, want_prob=True, want_sm=False)
    prob32_cm, prob32_sm = seg_probs_cm(seg_32, want_prob=True, want_sm=True)
    _, prob64_sm = seg_probs_cm(seg_64, want_prob=False, want_sm=True)

    threshold = (0.75 + 0.25 * sigmoid_rampup(iter_num, max_iterations)) * math.log(2.0)

    # unlabeled ROIs per scale (nearest) — computed under no_grad in the reference
    roi128 = nearest_resize_2d(unlabeled_ROIs, h128, w128).reshape(bz_label, -1)
    roi64 = nearest_resize_2d(unlabeled_ROIs, h64, w64).reshape(bz_label, -1)
    roi32 = nearest_resize_2d(unlabeled_ROIs, h32, w32).reshape(bz_label, -1)
    N128, N64, N32 = roi128.sum(), roi64.sum(), roi32.sum()

    def pad_roi(r, n):
        r = r.astype(jnp.float32).reshape(bz_label, 1, n)
        if bz_label < bz:
            r = jnp.concatenate(
                [r, jnp.zeros((bz - bz_label, 1, n), jnp.float32)], axis=0)
        return r

    # NOTE: the reference only uses ema_att for stage 1; stages 2-4 reuse the
    # student attention — the fused kernel reuses it in-registers.
    pusdo1, lp1 = stage_affinity_fused(low_feats[0], ema_att[0], prob16_cm,
                                       prob128_sm, pad_roi(roi128, h128 * w128),
                                       threshold)
    pusdo2, lp2 = stage_affinity_fused(low_feats[1], None, prob16_cm,
                                       prob64_sm, pad_roi(roi64, h64 * w64),
                                       threshold)
    pusdo3, lp3 = stage_affinity_fused(low_feats[2], None, prob16_cm,
                                       prob32_sm, pad_roi(roi32, h32 * w32),
                                       threshold)
    pusdo4, lp4 = stage_affinity_fused(low_feats[3], None, prob32_cm,
                                       prob32_sm, pad_roi(roi32, h32 * w32),
                                       threshold)

    # Reference's raw `.view()` semantics: the (bz, N, C)-ordered pseudo labels
    # are reinterpreted as (bz, C, h, w) without a permute.
    # TODO(synk): this mirrors the original module's .view() (which scrambles
    # channel/pixel order); the transpose below is the one remaining XLA
    # relayout between pallas calls — fold it into the resize in_spec if the
    # scramble is ever fixed upstream.
    def to_img(p_cm, h, w):
        return jnp.transpose(p_cm, (0, 2, 1)).reshape(bz, class_num, h, w)

    Ht, Wt = targets.shape[1], targets.shape[2]
    # Stages 3 and 4 share the same resolution -> identical bilinear matrices,
    # and resize is linear: pre-add them and resize 3 maps instead of 4.
    pusdo34 = pusdo3 + pusdo4
    pusdo_label = resize_average(
        [to_img(pusdo1, h128, w128), to_img(pusdo2, h64, w64),
         to_img(pusdo34, h32, w32)], Ht, Wt, divisor=4.0)

    # ROI-normalized losses.
    # TODO(synk): the reference's N==0 branch leaves an unreduced tensor; here a
    # zero-ROI stage contributes 0 instead of producing NaN/Inf.
    def norm_loss(lp, n_tot):
        s = lp[:bz_label].sum()
        return jnp.where(n_tot > 0, s / jnp.maximum(n_tot, 1.0), 0.0)

    loss1 = norm_loss(lp1, N128)
    loss2 = norm_loss(lp2, N64)
    loss3 = norm_loss(lp3, N32)
    loss4 = norm_loss(lp4, N32)

    if loss_index == 0:
        affinity_loss = loss1
    elif loss_index == 1:
        affinity_loss = loss1 + loss2
    elif loss_index == 2:
        affinity_loss = loss1 + loss2 + loss3
    elif loss_index == 3:
        affinity_loss = loss1 + loss2 + loss3 + loss4
    else:
        affinity_loss = jnp.zeros((1,), jnp.float32)

    return affinity_loss, pusdo_label


# ----------------------------------------------------------------------------
# main: deterministic small-shape smoke test
# ----------------------------------------------------------------------------
if __name__ == "__main__":
    key = jax.random.PRNGKey(0)
    bz, C, heads, L = 2, 4, 2, 2
    h128 = w128 = 32          # finest seg map
    h64 = w64 = 16
    h32 = w32 = 16            # forced by the hard-coded repeat(1, 256, 1)
    h16 = w16 = 8             # forced by the hard-coded repeat(1, 64, 1)
    Ht = Wt = 32              # target resolution

    ks = jax.random.split(key, 32)
    ki = iter(ks)

    def rnd(shape):
        return jax.random.normal(next(ki), shape, dtype=jnp.float32)

    def rnd_attn(n_q, n_k):
        # positive, row-stochastic attention maps; passed as bf16 (the dominant
        # HBM stream is halved; the kernel casts to f32 after load).
        a = jax.nn.softmax(rnd((bz, heads, n_q, n_k)), axis=-1)
        return a.astype(jnp.bfloat16)

    seg = rnd((bz, C, h128, w128))
    seg_16 = rnd((bz, C, h16, w16))
    seg_32 = rnd((bz, C, h32, w32))
    seg_64 = rnd((bz, C, h64, w64))
    outputs = (seg, seg_16, seg_32, seg_64)

    stage_shapes = [(h128 * w128, 64), (h64 * w64, 64),
                    (h32 * w32, 64), (h32 * w32, 256)]
    low_feats = [[rnd_attn(nq, nk) for _ in range(L)] for (nq, nk) in stage_shapes]
    ema_att = [[rnd_attn(nq, nk) for _ in range(L)] for (nq, nk) in stage_shapes]

    targets = jnp.zeros((bz, Ht, Wt), dtype=jnp.int32)
    unlabeled_ROIs = (jax.random.uniform(next(ki), (bz, Ht, Wt)) > 0.3
                      ).astype(jnp.float32)

    affinity_loss, pusdo_label = segformer_affinity_energy_loss(
        outputs, low_feats, unlabeled_ROIs, targets, ema_att,
        max_iterations=100, iter_num=10)

    affinity_loss = jax.block_until_ready(affinity_loss)
    pusdo_label = jax.block_until_ready(pusdo_label)

    assert pusdo_label.shape == (bz, C, Ht, Wt)
    assert np.isfinite(float(affinity_loss))
    assert np.all(np.isfinite(np.asarray(pusdo_label)))
    print("KERNEL_OK")
</pallas_src>

<mosaic_0001>
module attributes {stable_mosaic.version = 11 : i64} {
  func.func @kernel(%arg0: i32, %arg1: i32, %arg2: memref<1x4x1024xf32, #tpu.memory_space<vmem>>, %arg3: memref<1x4x1024xf32, #tpu.memory_space<vmem>>) attributes {dimension_semantics = [#tpu.dimension_semantics<parallel>, #tpu.dimension_semantics<parallel>], iteration_bounds = array<i64: 2, 1>, scalar_prefetch = 0 : i64, scratch_operands = 0 : i64, tpu.core_type = #tpu.core_type<tc>, window_params = [{transform_indices = @transform_0, window_bounds = array<i64: 1, 4, 1024>}, {transform_indices = @transform_1, window_bounds = array<i64: 1, 4, 1024>}]} {
    %c0 = arith.constant 0 : index
    %c0_0 = arith.constant 0 : index
    %c0_1 = arith.constant 0 : index
    %0 = vector.load %arg2[%c0, %c0_0, %c0_1] : memref<1x4x1024xf32, #tpu.memory_space<vmem>>, vector<1x4x1024xf32>
    %1 = vector.shape_cast %0 : vector<1x4x1024xf32> to vector<4x1024xf32>
    %2 = vector.extract_strided_slice %1 {offsets = [0, 0], sizes = [1, 1024], strides = [1, 1]} : vector<4x1024xf32> to vector<1x1024xf32>
    %3 = vector.extract_strided_slice %1 {offsets = [1, 0], sizes = [1, 1024], strides = [1, 1]} : vector<4x1024xf32> to vector<1x1024xf32>
    %4 = arith.maximumf %2, %3 : vector<1x1024xf32>
    %5 = vector.extract_strided_slice %1 {offsets = [2, 0], sizes = [1, 1024], strides = [1, 1]} : vector<4x1024xf32> to vector<1x1024xf32>
    %6 = arith.maximumf %4, %5 : vector<1x1024xf32>
    %7 = vector.extract_strided_slice %1 {offsets = [3, 0], sizes = [1, 1024], strides = [1, 1]} : vector<4x1024xf32> to vector<1x1024xf32>
    %8 = arith.maximumf %6, %7 : vector<1x1024xf32>
    %9 = vector.broadcast %8 : vector<1x1024xf32> to vector<4x1024xf32>
    %10 = arith.subf %1, %9 : vector<4x1024xf32>
    %11 = math.exp %10 : vector<4x1024xf32>
    %12 = vector.extract_strided_slice %11 {offsets = [0, 0], sizes = [1, 1024], strides = [1, 1]} : vector<4x1024xf32> to vector<1x1024xf32>
    %13 = vector.extract_strided_slice %11 {offsets = [1, 0], sizes = [1, 1024], strides = [1, 1]} : vector<4x1024xf32> to vector<1x1024xf32>
    %14 = arith.addf %12, %13 : vector<1x1024xf32>
    %15 = vector.extract_strided_slice %11 {offsets = [2, 0], sizes = [1, 1024], strides = [1, 1]} : vector<4x1024xf32> to vector<1x1024xf32>
    %16 = arith.addf %14, %15 : vector<1x1024xf32>
    %17 = vector.extract_strided_slice %11 {offsets = [3, 0], sizes = [1, 1024], strides = [1, 1]} : vector<4x1024xf32> to vector<1x1024xf32>
    %18 = arith.addf %16, %17 : vector<1x1024xf32>
    %19 = tpu.reciprocal %18 {approx = true} : vector<1x1024xf32> -> vector<1x1024xf32>
    %20 = vector.broadcast %19 : vector<1x1024xf32> to vector<4x1024xf32>
    %21 = arith.mulf %11, %20 : vector<4x1024xf32>
    %22 = vector.extract_strided_slice %21 {offsets = [0, 0], sizes = [1, 1024], strides = [1, 1]} : vector<4x1024xf32> to vector<1x1024xf32>
    %23 = vector.extract_strided_slice %21 {offsets = [1, 0], sizes = [1, 1024], strides = [1, 1]} : vector<4x1024xf32> to vector<1x1024xf32>
    %24 = arith.maximumf %22, %23 : vector<1x1024xf32>
    %25 = vector.extract_strided_slice %21 {offsets = [2, 0], sizes = [1, 1024], strides = [1, 1]} : vector<4x1024xf32> to vector<1x1024xf32>
    %26 = arith.maximumf %24, %25 : vector<1x1024xf32>
    %27 = vector.extract_strided_slice %21 {offsets = [3, 0], sizes = [1, 1024], strides = [1, 1]} : vector<4x1024xf32> to vector<1x1024xf32>
    %28 = arith.maximumf %26, %27 : vector<1x1024xf32>
    %29 = vector.broadcast %28 : vector<1x1024xf32> to vector<4x1024xf32>
    %30 = arith.subf %21, %29 : vector<4x1024xf32>
    %31 = math.exp %30 : vector<4x1024xf32>
    %32 = vector.extract_strided_slice %31 {offsets = [0, 0], sizes = [1, 1024], strides = [1, 1]} : vector<4x1024xf32> to vector<1x1024xf32>
    %33 = vector.extract_strided_slice %31 {offsets = [1, 0], sizes = [1, 1024], strides = [1, 1]} : vector<4x1024xf32> to vector<1x1024xf32>
    %34 = arith.addf %32, %33 : vector<1x1024xf32>
    %35 = vector.extract_strided_slice %31 {offsets = [2, 0], sizes = [1, 1024], strides = [1, 1]} : vector<4x1024xf32> to vector<1x1024xf32>
    %36 = arith.addf %34, %35 : vector<1x1024xf32>
    %37 = vector.extract_strided_slice %31 {offsets = [3, 0], sizes = [1, 1024], strides = [1, 1]} : vector<4x1024xf32> to vector<1x1024xf32>
    %38 = arith.addf %36, %37 : vector<1x1024xf32>
    %39 = tpu.reciprocal %38 {approx = true} : vector<1x1024xf32> -> vector<1x1024xf32>
    %40 = vector.broadcast %39 : vector<1x1024xf32> to vector<4x1024xf32>
    %41 = arith.mulf %31, %40 : vector<4x1024xf32>
    %c0_2 = arith.constant 0 : index
    %c0_3 = arith.constant 0 : index
    %c0_4 = arith.constant 0 : index
    %42 = vector.load %arg3[%c0_2, %c0_3, %c0_4] : memref<1x4x1024xf32, #tpu.memory_space<vmem>>, vector<1x4x1024xf32>
    %43 = vector.shape_cast %42 : vector<1x4x1024xf32> to vector<4x1024xf32>
    %44 = vector.shape_cast %41 : vector<4x1024xf32> to vector<1x4x1024xf32>
    tpu.vector_store %arg3[%c0_2, %c0_3, %c0_4], %44 {strides = array<i32>} : memref<1x4x1024xf32, #tpu.memory_space<vmem>>, vector<1x4x1024xf32>,
    return
  }
  func.func @transform_0(%arg0: i32, %arg1: i32) -> (i32, i32, i32) {
    %c0_i32 = arith.constant 0 : i32
    %c0_i32_0 = arith.constant 0 : i32
    return %arg0, %c0_i32, %arg1 : i32, i32, i32
  }
  func.func @transform_1(%arg0: i32, %arg1: i32) -> (i32, i32, i32) {
    %c0_i32 = arith.constant 0 : i32
    %c0_i32_0 = arith.constant 0 : i32
    return %arg0, %c0_i32, %arg1 : i32, i32, i32
  }
}

</mosaic_0001>

<llo_original>
// kernel: tpu_custom_call.1
$region0: #{tpu_custom_call.1}
  #allocation0 [shape = 'u32[]', space=smem, size = 0x4, offset = 0x4, fixed_abs, tag = 'smem constant byte address 0x4 - core index']
  #allocation1 [shape = 'u32[72,128]{1,0:T(1,128)}', space=vmem, size = 0x9000, scoped, tag = 'internal scratch']
  %s0 = inlined_call_operand.hbm [shape: f32[2,4,1024], index: 0, kind: input, shape index: {}]
  %s1 = inlined_call_operand.hbm [shape: f32[2,4,1024], index: 1, kind: output, shape index: {}]
  %s2 = sld [smem:[#allocation0]]
  $region41: #{tpu_custom_call.1} parent=0
    _
  %s4 = ssub.s32 1, %s2
  %s5 = scalar_select 0, %s4, %s2
  $region1: #{tpu_custom_call.1} parent=0
    #allocation2 [shape = 'u8[32768]{0}', space=vmem, size = 0x8000, scoped, tag = 'input window, operand 0']
    #allocation3 [shape = 's32[2]{0}', space=sflag, size = 0x8, scoped, tag = 'scoped memory for tpu_custom_call.1']
    #allocation4 [shape = 's32[2]{0}', space=sflag, size = 0x8, scoped, tag = 'scoped memory for tpu_custom_call.1']
    #allocation5 [shape = 'u8[32768]{0}', space=vmem, size = 0x8000, scoped, tag = 'output window, operand 0']
    %6 = vsyncpa [#allocation3], 0
    %s7 = scalar_lea.sflag [#allocation3], 1
    %8 = vsyncpa %s7, 0
    %9 = vsyncpa [#allocation4], 0
    %s10 = scalar_lea.sflag [#allocation4], 1
    %11 = vsyncpa %s10, 0
    loop: start=0, step=1, limit=4
    $region2: #{tpu_custom_call.1} parent=1 // loop_pre_header
      _
    $region3: #{tpu_custom_call.1} parent=1 // loop_header
      %s13 = sphi 0, %s17
      %p14 = scmp.ge.s32.totalorder %s13, 4
      %s20 = sphi 0, %s32
      %s21 = sphi 0, %s28
      %s22 = sphi 0, %s20
      %s23 = sphi 0, %s21
      %s24 = sphi 0, %s22
      %s25 = sphi 0, %s23
      %s37 = sphi 0, %s39
      %s40 = sphi 0, %s37
      %s41 = sphi 0, %s40
      %s57 = sphi 0, %s41
      %s65 = sphi 0, %s67
      %s68 = sphi 0, %s65
      %s69 = sphi 0, %s68
      %s85 = sphi 0, %s69
    $region4: #{tpu_custom_call.1} parent=1 // loop_header_branch
      %16 = sbr.rel (%p14) target = $region8
    $region5: #{tpu_custom_call.1} parent=1 // loop_body
      %s18 = ssub.s32 %s13, 1
      %s19 = ssub.s32 %s13, 2
      %s26 = sadd.s32 1, %s21
      %p27 = scmp.ge.s32.totalorder %s26, 1
      %s28 = scalar_select %p27, 0, %s26
      %s29 = sadd.s32 1, %s20
      %s30 = scalar_select %p27, %s29, %s20
      %p31 = scmp.ge.s32.totalorder %s30, 2
      %s32 = scalar_select %p31, 0, %s30
      %s33 = ssub.s32 %s20, %s32
      %s34 = ssub.s32 %s21, %s28
      %s35 = sor.u32 %s33, %s34
      %p36 = scmp.eq.s32.totalorder %s35, 0
      %s38 = sadd.s32 %s37, 1
      %s39 = scalar_select %p36, %s37, %s38
      %p42 = pneg %p36
      %p43 = scmp.eq.s32.totalorder %s13, 1
      %p44 = por %p42, %p43
      %p45 = scmp.ne.s32.totalorder %s37, %s40
      %p46 = scmp.eq.s32.totalorder %s13, 0
      %p47 = por %p45, %p46
      %p48 = scmp.ne.s32.totalorder %s37, %s40
      %p49 = scmp.eq.s32.totalorder %s18, 1
      %p50 = por %p48, %p49
      %p51 = scmp.ne.s32.totalorder %s40, %s41
      %p52 = scmp.eq.s32.totalorder %s18, 0
      %p53 = por %p51, %p52
      %p54 = scmp.ne.s32.totalorder %s40, %s41
      %p55 = scmp.eq.s32.totalorder %s19, 1
      %p56 = por %p54, %p55
      %p58 = scmp.ne.s32.totalorder %s41, %s57
      %p59 = scmp.eq.s32.totalorder %s19, 0
      %p60 = por %p58, %p59
      %s61 = ssub.s32 %s20, %s32
      %s62 = ssub.s32 %s21, %s28
      %s63 = sor.u32 %s61, %s62
      %p64 = scmp.eq.s32.totalorder %s63, 0
      %s66 = sadd.s32 %s65, 1
      %s67 = scalar_select %p64, %s65, %s66
      %p70 = pneg %p64
      %p71 = scmp.eq.s32.totalorder %s13, 1
      %p72 = por %p70, %p71
      %p73 = scmp.ne.s32.totalorder %s65, %s68
      %p74 = scmp.eq.s32.totalorder %s13, 0
      %p75 = por %p73, %p74
      %p76 = scmp.ne.s32.totalorder %s65, %s68
      %p77 = scmp.eq.s32.totalorder %s18, 1
      %p78 = por %p76, %p77
      %p79 = scmp.ne.s32.totalorder %s68, %s69
      %p80 = scmp.eq.s32.totalorder %s18, 0
      %p81 = por %p79, %p80
      %p82 = scmp.ne.s32.totalorder %s68, %s69
      %p83 = scmp.eq.s32.totalorder %s19, 1
      %p84 = por %p82, %p83
      %p86 = scmp.ne.s32.totalorder %s69, %s85
      %p87 = scmp.eq.s32.totalorder %s19, 0
      %p88 = por %p86, %p87
      %p89 = scmp.le.s32.totalorder 1, %s13
      %p90 = scmp.lt.s32.totalorder %s13, 3
      %p91 = pnand %p89, %p90
      %p92 = pneg %p91
      // Predicated region
      $region9: #{tpu_custom_call.1} parent=5 // pred_check
        _
      $region10: #{tpu_custom_call.1} parent=5 // pred_check_branch
        %94 = sbr.rel (%p91) target = $region12
      $region11: #{tpu_custom_call.1} parent=5 // pred_region
        %s95 = ssub.s32 %s13, 1
      $region12: #{tpu_custom_call.1} parent=5 // pred_fallthru
        _
      %p96 = scmp.lt.s32.totalorder %s13, 2
      // Predicated region
      $region13: #{tpu_custom_call.1} parent=5 // pred_check
        %p97 = pneg %p96
      $region14: #{tpu_custom_call.1} parent=5 // pred_check_branch
        %99 = sbr.rel (%p97) target = $region16
      $region15: #{tpu_custom_call.1} parent=5 // pred_region
        // Predicated region
        $region17: #{tpu_custom_call.1} parent=15 // pred_check
          %p100 = pneg %p47
        $region18: #{tpu_custom_call.1} parent=15 // pred_check_branch
          %102 = sbr.rel (%p100) target = $region20
        $region19: #{tpu_custom_call.1} parent=15 // pred_region
          %s103 = sand.u32 %s37, 1
          %s104 = scalar_lea.sflag [#allocation3], %s103
          %s105 = sand.u32 %s37, 1
          %s106 = smul.addr %s105, 32
          %s107 = scalar_lea.vmem [#allocation2], %s106
          %s108 = smul.u32 8, %s21
          %110 = vsyncadd %s104, 0
          %s111 = smul.addr %s20, 8
          %s112 = sadd.s32 %s108, %s111
          %s113 = smul.addr %s112, 4
          %s114 = scalar_lea.hbm %s0, %s113
          %s116 = sshll.u32 %s114, 4
          %s117 = int_to_ptr.hbm [resolvable:$true] %s116
          %s118 = sshll.u32 %s107, 4
          %s119 = int_to_ptr.vmem [resolvable:$true] %s118
          %121 = dma.hbm_to_vmem [thread:$0]  %s117, 512, %s119, %s104
        $region20: #{tpu_custom_call.1} parent=15 // pred_fallthru
          _
      $region16: #{tpu_custom_call.1} parent=5 // pred_fallthru
        _
      %p122 = scmp.le.s32.totalorder 1, %s13
      %p123 = scmp.lt.s32.totalorder %s13, 3
      %p124 = pnand %p122, %p123
      %p125 = pneg %p124
      // Predicated region
      $region21: #{tpu_custom_call.1} parent=5 // pred_check
        _
      $region22: #{tpu_custom_call.1} parent=5 // pred_check_branch
        %127 = sbr.rel (%p124) target = $region24
      $region23: #{tpu_custom_call.1} parent=5 // pred_region
        %s128 = ssub.s32 %s13, 1
        %s129 = sand.u32 %s40, 1
        %s130 = scalar_lea.sflag [#allocation3], %s129
        %s131 = sand.u32 %s40, 1
        %s132 = smul.addr %s131, 32
        %s133 = scalar_lea.vmem [#allocation2], %s132
        // Predicated region
        $region25: #{tpu_custom_call.1} parent=23 // pred_check
          %p134 = pneg %p53
        $region26: #{tpu_custom_call.1} parent=23 // pred_check_branch
          %136 = sbr.rel (%p134) target = $region28
        $region27: #{tpu_custom_call.1} parent=23 // pred_region
          %138 = dma.done %s130, 512
        $region28: #{tpu_custom_call.1} parent=23 // pred_fallthru
          _
        %s139 = sand.u32 %s40, 1
        %s140 = scalar_lea.sflag [#allocation3], %s139
        %s141 = sand.u32 %s40, 1
        %s142 = smul.addr %s141, 32
        %s143 = scalar_lea.vmem [#allocation2], %s142
        %p144 = pneg %p53
        %p145 = pneg %p50
        %p146 = pneg %p81
        %p147 = pneg %p78
        %s148 = sand.u32 %s68, 1
        %s149 = scalar_lea.sflag [#allocation4], %s148
        %s150 = sand.u32 %s68, 1
        %s151 = smul.addr %s150, 32
        %s152 = scalar_lea.vmem [#allocation5], %s151
        %s153 = smul.u32 8, %s23
        %s154 = smul.u32 8, %s23
        %v155 = vld [vmem:[%s133] sm:$0xff]
        %v156 = vld [vmem:[%s133 + $0x8] sm:$0xff]
        %v157 = vld [vmem:[%s133 + $0x10] sm:$0xff]
        %v158 = vld [vmem:[%s133 + $0x18] sm:$0xff]
        %v163 = vrot.slane %v155, 5
        %v164 = vrot.slane %v163, 4
        %v165 = vrot.slane %v156, 5
        %v166 = vrot.slane %v165, 4
        %v167 = vrot.slane %v157, 5
        %v168 = vrot.slane %v167, 4
        %v169 = vrot.slane %v158, 5
        %v170 = vrot.slane %v169, 4
        %v175 = vmax.f32 %v155, %v164
        %v176 = vmax.f32 %v156, %v166
        %v177 = vmax.f32 %v157, %v168
        %v178 = vmax.f32 %v158, %v170
        %v179 = vrot.slane %v155, 6
        %v180 = vrot.slane %v179, 4
        %v181 = vrot.slane %v156, 6
        %v182 = vrot.slane %v181, 4
        %v183 = vrot.slane %v157, 6
        %v184 = vrot.slane %v183, 4
        %v185 = vrot.slane %v158, 6
        %v186 = vrot.slane %v185, 4
        %v191 = vmax.f32 %v175, %v180
        %v192 = vmax.f32 %v176, %v182
        %v193 = vmax.f32 %v177, %v184
        %v194 = vmax.f32 %v178, %v186
        %v195 = vrot.slane %v155, 7
        %v196 = vrot.slane %v195, 4
        %v197 = vrot.slane %v156, 7
        %v198 = vrot.slane %v197, 4
        %v199 = vrot.slane %v157, 7
        %v200 = vrot.slane %v199, 4
        %v201 = vrot.slane %v158, 7
        %v202 = vrot.slane %v201, 4
        %v207 = vmax.f32 %v191, %v196
        %v208 = vmax.f32 %v192, %v198
        %v209 = vmax.f32 %v193, %v200
        %v210 = vmax.f32 %v194, %v202
        %v215 = vperm.slane %v207, 0
        %v216 = vperm.slane %v207, 4
        %v217 = vperm.slane %v208, 0
        %v218 = vperm.slane %v208, 4
        %v219 = vperm.slane %v209, 0
        %v220 = vperm.slane %v209, 4
        %v221 = vperm.slane %v210, 0
        %v222 = vperm.slane %v210, 4
        %v231 = vperm.slane %v215, 0
        %v232 = vperm.slane %v216, 0
        %v233 = vperm.slane %v217, 0
        %v234 = vperm.slane %v218, 0
        %v235 = vperm.slane %v219, 0
        %v236 = vperm.slane %v220, 0
        %v237 = vperm.slane %v221, 0
        %v238 = vperm.slane %v222, 0
        %v247 = vrot.slane %v232, 4
        %v248 = vrot.slane %v234, 4
        %v249 = vrot.slane %v236, 4
        %v250 = vrot.slane %v238, 4
        %vm251 = vcmask 1043456
        %v252 = vsel %vm251, %v231, %v247
        %v253 = vsel %vm251, %v233, %v248
        %v254 = vsel %vm251, %v235, %v249
        %v255 = vsel %vm251, %v237, %v250
        %v260 = vsub.f32 %v155, %v252
        %v261 = vsub.f32 %v156, %v253
        %v262 = vsub.f32 %v157, %v254
        %v263 = vsub.f32 %v158, %v255
        %v264 = vmul.f32 %v260, 1.442695
        %v265 = vpow.pop %v264
        %v266 = vmul.f32 %v261, 1.442695
        %v267 = vpow.pop %v266
        %v268 = vmul.f32 %v262, 1.442695
        %v269 = vpow.pop %v268
        %v270 = vmul.f32 %v263, 1.442695
        %v271 = vpow.pop %v270
        %v276 = vrot.slane %v265, 5
        %v277 = vrot.slane %v276, 4
        %v278 = vrot.slane %v267, 5
        %v279 = vrot.slane %v278, 4
        %v280 = vrot.slane %v269, 5
        %v281 = vrot.slane %v280, 4
        %v282 = vrot.slane %v271, 5
        %v283 = vrot.slane %v282, 4
        %v288 = vadd.f32 %v265, %v277
        %v289 = vadd.f32 %v267, %v279
        %v290 = vadd.f32 %v269, %v281
        %v291 = vadd.f32 %v271, %v283
        %v292 = vrot.slane %v265, 6
        %v293 = vrot.slane %v292, 4
        %v294 = vrot.slane %v267, 6
        %v295 = vrot.slane %v294, 4
        %v296 = vrot.slane %v269, 6
        %v297 = vrot.slane %v296, 4
        %v298 = vrot.slane %v271, 6
        %v299 = vrot.slane %v298, 4
        %v304 = vadd.f32 %v288, %v293
        %v305 = vadd.f32 %v289, %v295
        %v306 = vadd.f32 %v290, %v297
        %v307 = vadd.f32 %v291, %v299
        %v308 = vrot.slane %v265, 7
        %v309 = vrot.slane %v308, 4
        %v310 = vrot.slane %v267, 7
        %v311 = vrot.slane %v310, 4
        %v312 = vrot.slane %v269, 7
        %v313 = vrot.slane %v312, 4
        %v314 = vrot.slane %v271, 7
        %v315 = vrot.slane %v314, 4
        %v320 = vadd.f32 %v304, %v309
        %v321 = vadd.f32 %v305, %v311
        %v322 = vadd.f32 %v306, %v313
        %v323 = vadd.f32 %v307, %v315
        %v324 = vrcp.pop %v320
        %v325 = vrcp.pop %v321
        %v326 = vrcp.pop %v322
        %v327 = vrcp.pop %v323
        %v332 = vperm.slane %v324, 0
        %v333 = vperm.slane %v324, 4
        %v334 = vperm.slane %v325, 0
        %v335 = vperm.slane %v325, 4
        %v336 = vperm.slane %v326, 0
        %v337 = vperm.slane %v326, 4
        %v338 = vperm.slane %v327, 0
        %v339 = vperm.slane %v327, 4
        %v348 = vperm.slane %v332, 0
        %v349 = vperm.slane %v333, 0
        %v350 = vperm.slane %v334, 0
        %v351 = vperm.slane %v335, 0
        %v352 = vperm.slane %v336, 0
        %v353 = vperm.slane %v337, 0
        %v354 = vperm.slane %v338, 0
        %v355 = vperm.slane %v339, 0
        %v364 = vrot.slane %v349, 4
        %v365 = vrot.slane %v351, 4
        %v366 = vrot.slane %v353, 4
        %v367 = vrot.slane %v355, 4
        %v368 = vsel %vm251, %v348, %v364
        %v369 = vsel %vm251, %v350, %v365
        %v370 = vsel %vm251, %v352, %v366
        %v371 = vsel %vm251, %v354, %v367
        %v376 = vmul.f32 %v265, %v368
        %v377 = vmul.f32 %v267, %v369
        %v378 = vmul.f32 %v269, %v370
        %v379 = vmul.f32 %v271, %v371
        %v384 = vrot.slane %v376, 5
        %v385 = vrot.slane %v384, 4
        %v386 = vrot.slane %v377, 5
        %v387 = vrot.slane %v386, 4
        %v388 = vrot.slane %v378, 5
        %v389 = vrot.slane %v388, 4
        %v390 = vrot.slane %v379, 5
        %v391 = vrot.slane %v390, 4
        %v396 = vmax.f32 %v376, %v385
        %v397 = vmax.f32 %v377, %v387
        %v398 = vmax.f32 %v378, %v389
        %v399 = vmax.f32 %v379, %v391
        %v400 = vrot.slane %v376, 6
        %v401 = vrot.slane %v400, 4
        %v402 = vrot.slane %v377, 6
        %v403 = vrot.slane %v402, 4
        %v404 = vrot.slane %v378, 6
        %v405 = vrot.slane %v404, 4
        %v406 = vrot.slane %v379, 6
        %v407 = vrot.slane %v406, 4
        %v412 = vmax.f32 %v396, %v401
        %v413 = vmax.f32 %v397, %v403
        %v414 = vmax.f32 %v398, %v405
        %v415 = vmax.f32 %v399, %v407
        %v416 = vrot.slane %v376, 7
        %v417 = vrot.slane %v416, 4
        %v418 = vrot.slane %v377, 7
        %v419 = vrot.slane %v418, 4
        %v420 = vrot.slane %v378, 7
        %v421 = vrot.slane %v420, 4
        %v422 = vrot.slane %v379, 7
        %v423 = vrot.slane %v422, 4
        %v428 = vmax.f32 %v412, %v417
        %v429 = vmax.f32 %v413, %v419
        %v430 = vmax.f32 %v414, %v421
        %v431 = vmax.f32 %v415, %v423
        %v436 = vperm.slane %v428, 0
        %v437 = vperm.slane %v428, 4
        %v438 = vperm.slane %v429, 0
        %v439 = vperm.slane %v429, 4
        %v440 = vperm.slane %v430, 0
        %v441 = vperm.slane %v430, 4
        %v442 = vperm.slane %v431, 0
        %v443 = vperm.slane %v431, 4
        %v452 = vperm.slane %v436, 0
        %v453 = vperm.slane %v437, 0
        %v454 = vperm.slane %v438, 0
        %v455 = vperm.slane %v439, 0
        %v456 = vperm.slane %v440, 0
        %v457 = vperm.slane %v441, 0
        %v458 = vperm.slane %v442, 0
        %v459 = vperm.slane %v443, 0
        %v468 = vrot.slane %v453, 4
        %v469 = vrot.slane %v455, 4
        %v470 = vrot.slane %v457, 4
        %v471 = vrot.slane %v459, 4
        %v472 = vsel %vm251, %v452, %v468
        %v473 = vsel %vm251, %v454, %v469
        %v474 = vsel %vm251, %v456, %v470
        %v475 = vsel %vm251, %v458, %v471
        %v480 = vsub.f32 %v376, %v472
        %v481 = vsub.f32 %v377, %v473
        %v482 = vsub.f32 %v378, %v474
        %v483 = vsub.f32 %v379, %v475
        %v484 = vmul.f32 %v480, 1.442695
        %v485 = vpow.pop %v484
        %v486 = vmul.f32 %v481, 1.442695
        %v487 = vpow.pop %v486
        %v488 = vmul.f32 %v482, 1.442695
        %v489 = vpow.pop %v488
        %v490 = vmul.f32 %v483, 1.442695
        %v491 = vpow.pop %v490
        %v496 = vrot.slane %v485, 5
        %v497 = vrot.slane %v496, 4
        %v498 = vrot.slane %v487, 5
        %v499 = vrot.slane %v498, 4
        %v500 = vrot.slane %v489, 5
        %v501 = vrot.slane %v500, 4
        %v502 = vrot.slane %v491, 5
        %v503 = vrot.slane %v502, 4
        %v508 = vadd.f32 %v485, %v497
        %v509 = vadd.f32 %v487, %v499
        %v510 = vadd.f32 %v489, %v501
        %v511 = vadd.f32 %v491, %v503
        %v512 = vrot.slane %v485, 6
        %v513 = vrot.slane %v512, 4
        %v514 = vrot.slane %v487, 6
        %v515 = vrot.slane %v514, 4
        %v516 = vrot.slane %v489, 6
        %v517 = vrot.slane %v516, 4
        %v518 = vrot.slane %v491, 6
        %v519 = vrot.slane %v518, 4
        %v524 = vadd.f32 %v508, %v513
        %v525 = vadd.f32 %v509, %v515
        %v526 = vadd.f32 %v510, %v517
        %v527 = vadd.f32 %v511, %v519
        %v528 = vrot.slane %v485, 7
        %v529 = vrot.slane %v528, 4
        %v530 = vrot.slane %v487, 7
        %v531 = vrot.slane %v530, 4
        %v532 = vrot.slane %v489, 7
        %v533 = vrot.slane %v532, 4
        %v534 = vrot.slane %v491, 7
        %v535 = vrot.slane %v534, 4
        %v540 = vadd.f32 %v524, %v529
        %v541 = vadd.f32 %v525, %v531
        %v542 = vadd.f32 %v526, %v533
        %v543 = vadd.f32 %v527, %v535
        %v544 = vrcp.pop %v540
        %v545 = vrcp.pop %v541
        %v546 = vrcp.pop %v542
        %v547 = vrcp.pop %v543
        %v552 = vperm.slane %v544, 0
        %v553 = vperm.slane %v544, 4
        %v554 = vperm.slane %v545, 0
        %v555 = vperm.slane %v545, 4
        %v556 = vperm.slane %v546, 0
        %v557 = vperm.slane %v546, 4
        %v558 = vperm.slane %v547, 0
        %v559 = vperm.slane %v547, 4
        %v568 = vperm.slane %v552, 0
        %v569 = vperm.slane %v553, 0
        %v570 = vperm.slane %v554, 0
        %v571 = vperm.slane %v555, 0
        %v572 = vperm.slane %v556, 0
        %v573 = vperm.slane %v557, 0
        %v574 = vperm.slane %v558, 0
        %v575 = vperm.slane %v559, 0
        %v584 = vrot.slane %v569, 4
        %v585 = vrot.slane %v571, 4
        %v586 = vrot.slane %v573, 4
        %v587 = vrot.slane %v575, 4
        %v588 = vsel %vm251, %v568, %v584
        %v589 = vsel %vm251, %v570, %v585
        %v590 = vsel %vm251, %v572, %v586
        %v591 = vsel %vm251, %v574, %v587
        %v596 = vmul.f32 %v485, %v588
        %v597 = vmul.f32 %v487, %v589
        %v598 = vmul.f32 %v489, %v590
        %v599 = vmul.f32 %v491, %v591
        %600 = vst [vmem:[%s152] sm:$0xff] %v596
        %601 = vst [vmem:[%s152 + $0x8] sm:$0xff] %v597
        %602 = vst [vmem:[%s152 + $0x10] sm:$0xff] %v598
        %603 = vst [vmem:[%s152 + $0x18] sm:$0xff] %v599
        %s604 = sand.u32 %s68, 1
        %s605 = scalar_lea.sflag [#allocation4], %s604
        %s606 = sand.u32 %s68, 1
        %s607 = smul.addr %s606, 32
        %s608 = scalar_lea.vmem [#allocation5], %s607
        // Predicated region
        $region29: #{tpu_custom_call.1} parent=23 // pred_check
          %p609 = pneg %p78
        $region30: #{tpu_custom_call.1} parent=23 // pred_check_branch
          %611 = sbr.rel (%p609) target = $region32
        $region31: #{tpu_custom_call.1} parent=23 // pred_region
          %s612 = smul.u32 8, %s23
          %614 = vsyncadd %s605, 0
          %s615 = smul.addr %s22, 8
          %s616 = sadd.s32 %s612, %s615
          %s617 = smul.addr %s616, 4
          %s618 = scalar_lea.hbm %s1, %s617
          %s620 = sshll.u32 %s608, 4
          %s621 = int_to_ptr.vmem [resolvable:$true] %s620
          %s622 = sshll.u32 %s618, 4
          %s623 = int_to_ptr.hbm [resolvable:$true] %s622
          %625 = dma.vmem_to_hbm [thread:$0]  %s621, 512, %s623, %s605
        $region32: #{tpu_custom_call.1} parent=23 // pred_fallthru
          _
      $region24: #{tpu_custom_call.1} parent=5 // pred_fallthru
        _
      %p626 = scmp.le.s32.totalorder 2, %s13
      // Predicated region
      $region33: #{tpu_custom_call.1} parent=5 // pred_check
        %p627 = pneg %p626
      $region34: #{tpu_custom_call.1} parent=5 // pred_check_branch
        %629 = sbr.rel (%p627) target = $region36
      $region35: #{tpu_custom_call.1} parent=5 // pred_region
        %s630 = ssub.s32 %s13, 2
        // Predicated region
        $region37: #{tpu_custom_call.1} parent=35 // pred_check
          %p631 = pneg %p84
        $region38: #{tpu_custom_call.1} parent=35 // pred_check_branch
          %633 = sbr.rel (%p631) target = $region40
        $region39: #{tpu_custom_call.1} parent=35 // pred_region
          %s634 = sand.u32 %s69, 1
          %s635 = scalar_lea.sflag [#allocation4], %s634
          %s636 = sand.u32 %s69, 1
          %s637 = smul.addr %s636, 32
          %s638 = scalar_lea.vmem [#allocation5], %s637
          %640 = dma.done %s635, 512
        $region40: #{tpu_custom_call.1} parent=35 // pred_fallthru
          _
      $region36: #{tpu_custom_call.1} parent=5 // pred_fallthru
        _
    $region6: #{tpu_custom_call.1} parent=1 // loop_footer
      %s17 = sadd.s32 1, %s13
    $region7: #{tpu_custom_call.1} parent=1 // loop_footer_branch
      %12 = sbr.rel target = $region3
    $region8: #{tpu_custom_call.1} parent=1 // loop_exit
      _
    %641 = vsyncpa [#allocation3], 1
    %s642 = scalar_lea.sflag [#allocation3], 1
    %643 = vsyncpa %s642, 1
    %644 = vsyncpa [#allocation4], 1
    %s645 = scalar_lea.sflag [#allocation4], 1
    %646 = vsyncpa %s645, 1

</llo_original>
